<compile_context>
chip_gen: v6e
topology: v6e:2x2x1
jax: 0.10.0
libtpu: 0.0.40
codegen_flags: <defaults>
</compile_context>

<pallas_src>
import jax
import jax.numpy as jnp
from jax.experimental import pallas as pl
from jax.experimental.pallas import tpu as pltpu

_LANES = 128
_TM_TARGET = 2048   # rows per tile -> 1 MiB per f32 input block


def _focal_loss_kernel(x_ref, t_ref, out_ref,
                       min_acc, max_acc, sumd_acc, sumd3_acc):
    """Grid = (row-tile,). Single reduction axis; partials written at finalize."""
    i = pl.program_id(0)

    @pl.when(i == 0)
    def _init():
        min_acc[...] = jnp.full_like(min_acc, jnp.inf)
        max_acc[...] = jnp.full_like(max_acc, -jnp.inf)
        sumd_acc[...] = jnp.zeros_like(sumd_acc)
        sumd3_acc[...] = jnp.zeros_like(sumd3_acc)

    tm = x_ref.shape[0]
    d = jnp.abs(x_ref[...].astype(jnp.float32) - t_ref[...].astype(jnp.float32))
    mse = d * d
    d3 = mse * d

    # Tile-aligned reshape + axis-0 reduce folds (tm, 128) -> (8, 128) on the
    # VPU before touching the tiny resident accumulators (no masking needed:
    # the grid only ever covers full, valid blocks).
    mse_f = mse.reshape(tm // 8, 8, _LANES)
    min_acc[...] = jnp.minimum(min_acc[...], jnp.min(mse_f, axis=0))
    max_acc[...] = jnp.maximum(max_acc[...], jnp.max(mse_f, axis=0))
    sumd_acc[...] = sumd_acc[...] + jnp.sum(d.reshape(tm // 8, 8, _LANES), axis=0)
    sumd3_acc[...] = sumd3_acc[...] + jnp.sum(d3.reshape(tm // 8, 8, _LANES), axis=0)

    @pl.when(i == pl.num_programs(0) - 1)
    def _finalize():
        out_ref[0] = min_acc[...]
        out_ref[1] = max_acc[...]
        out_ref[2] = sumd_acc[...]
        out_ref[3] = sumd3_acc[...]


def focal_loss_g(inp, target, gamma=0):
    """FocalLossG.forward — gamma kept for signature parity but unused (as in PyTorch)."""
    del gamma
    assert inp.shape == target.shape, "input/target must have identical shapes"
    total = int(inp.size)
    assert total > 0, "empty input"
    itemsize = jnp.dtype(inp.dtype).itemsize

    x_flat = inp.reshape(-1)
    t_flat = target.reshape(-1)

    rows_full = total // _LANES          # complete 128-lane rows
    rem_lanes = total % _LANES           # elements in a trailing partial row

    # Sublane packing of the streamed dtype: 8 (f32), 16 (bf16), 32 (int8/fp8).
    sublane = max(8, 32 // max(itemsize, 1))
    tm = min(_TM_TARGET, (rows_full // sublane) * sublane)
    steps = rows_full // tm if tm > 0 else 0
    main_rows = steps * tm
    main_elems = main_rows * _LANES

    mn = mx = sd = sd3 = None

    if steps > 0:
        if rem_lanes:
            # TODO(synk): this pad copies both inputs once; a 1-D-block kernel
            # variant would stream ragged (total % 128 != 0) arrays copy-free.
            # The padded row is never read by the kernel (it lives past
            # main_rows) and the tail is recomputed from the unpadded flats.
            pad = _LANES - rem_lanes
            x2 = jnp.pad(x_flat, (0, pad)).reshape(rows_full + 1, _LANES)
            t2 = jnp.pad(t_flat, (0, pad)).reshape(rows_full + 1, _LANES)
        else:
            x2 = x_flat.reshape(rows_full, _LANES)
            t2 = t_flat.reshape(rows_full, _LANES)

        partials = pl.pallas_call(
            _focal_loss_kernel,
            out_shape=jax.ShapeDtypeStruct((4, 8, _LANES), jnp.float32),
            grid_spec=pltpu.PrefetchScalarGridSpec(
                num_scalar_prefetch=0,
                grid=(steps,),
                in_specs=[
                    pl.BlockSpec((tm, _LANES), lambda i: (i, 0)),
                    pl.BlockSpec((tm, _LANES), lambda i: (i, 0)),
                ],
                # One resident partials block, written once at finalize.
                out_specs=pl.BlockSpec((4, 8, _LANES), lambda i: (0, 0, 0)),
                scratch_shapes=[pltpu.VMEM((8, _LANES), jnp.float32)] * 4,
            ),
            compiler_params=pltpu.CompilerParams(
                dimension_semantics=("arbitrary",)),
            cost_estimate=pl.CostEstimate(
                flops=8 * main_elems,
                transcendentals=0,
                bytes_accessed=2 * main_elems * itemsize + 4 * 8 * _LANES * 4),
        )(x2, t2)

        mn = jnp.min(partials[0])
        mx = jnp.max(partials[1])
        sd = jnp.sum(partials[2])
        sd3 = jnp.sum(partials[3])

    tail_n = total - main_elems
    if tail_n > 0:
        # Small, tile-unaligned leftover (< tm rows + one partial row, <~1 MiB):
        # fold it in with plain jnp; negligible next to the streamed bulk.
        d = jnp.abs(x_flat[main_elems:].astype(jnp.float32)
                    - t_flat[main_elems:].astype(jnp.float32))
        mse = d * d
        t_mn, t_mx = jnp.min(mse), jnp.max(mse)
        t_sd, t_sd3 = jnp.sum(d), jnp.sum(mse * d)
        if steps > 0:
            mn = jnp.minimum(mn, t_mn)
            mx = jnp.maximum(mx, t_mx)
            sd = sd + t_sd
            sd3 = sd3 + t_sd3
        else:
            mn, mx, sd, sd3 = t_mn, t_mx, t_sd, t_sd3

    # loss = mean(((d^2 - mn) / (mx - mn)) * d) = (sum(d^3) - mn*sum(d)) / ((mx-mn)*N)
    # Degenerate mx == mn (e.g. input == target) gives 0/0 -> NaN, matching PyTorch.
    return (sd3 - mn * sd) / ((mx - mn) * jnp.float32(total))


def _reference_focal_loss_g(inp, target):
    """Pure-JAX reference mirroring the PyTorch forward, for validation."""
    x = inp.astype(jnp.float32)
    t = target.astype(jnp.float32)
    diff = jnp.abs(x - t)
    mse = diff ** 2
    shifted = mse - mse.min()
    ratios = shifted * (1.0 / shifted.max())
    return (ratios * diff).mean()


if __name__ == "__main__":
    key = jax.random.PRNGKey(0)
    k1, k2 = jax.random.split(key)
    # NCHW, matching typical use of this loss on conv feature maps.
    x = jax.random.normal(k1, (2, 4, 16, 16), dtype=jnp.float32)
    y = jax.random.normal(k2, (2, 4, 16, 16), dtype=jnp.float32)

    loss = focal_loss_g(x, y)
    jax.block_until_ready(loss)

    ref = _reference_focal_loss_g(x, y)
    assert jnp.allclose(loss, ref, rtol=1e-5, atol=1e-6), (loss, ref)

    print("KERNEL_OK")
</pallas_src>

<mosaic_0001>
module attributes {stable_mosaic.version = 11 : i64} {
  func.func @_focal_loss_kernel(%arg0: i32, %arg1: memref<16x128xf32, #tpu.memory_space<vmem>>, %arg2: memref<16x128xf32, #tpu.memory_space<vmem>>, %arg3: memref<4x8x128xf32, #tpu.memory_space<vmem>>, %arg4: memref<8x128xf32, #tpu.memory_space<vmem>>, %arg5: memref<8x128xf32, #tpu.memory_space<vmem>>, %arg6: memref<8x128xf32, #tpu.memory_space<vmem>>, %arg7: memref<8x128xf32, #tpu.memory_space<vmem>>) attributes {dimension_semantics = [#tpu.dimension_semantics<arbitrary>], iteration_bounds = array<i64: 1>, scalar_prefetch = 0 : i64, scratch_operands = 4 : i64, tpu.core_type = #tpu.core_type<tc>, window_params = [{transform_indices = @transform_0, window_bounds = array<i64: 16, 128>}, {transform_indices = @transform_1, window_bounds = array<i64: 16, 128>}, {pipeline_mode = #tpu.pipeline_mode<synchronous>, transform_indices = @transform_2, window_bounds = array<i64: 4, 8, 128>}]} {
    %c0_i32 = arith.constant 0 : i32
    %0 = arith.cmpi eq, %arg0, %c0_i32 : i32
    %1 = arith.extui %0 : i1 to i32
    %c0_i32_0 = arith.constant 0 : i32
    %2 = arith.cmpi ne, %1, %c0_i32_0 : i32
    scf.if %2 {
      %cst_25 = arith.constant 0x7F800000 : f32
      %31 = vector.broadcast %cst_25 : f32 to vector<8x128xf32>
      %c0_26 = arith.constant 0 : index
      %c0_27 = arith.constant 0 : index
      %32 = vector.load %arg4[%c0_26, %c0_27] : memref<8x128xf32, #tpu.memory_space<vmem>>, vector<8x128xf32>
      tpu.vector_store %arg4[%c0_26, %c0_27], %31 {strides = array<i32>} : memref<8x128xf32, #tpu.memory_space<vmem>>, vector<8x128xf32>,
      %cst_28 = arith.constant 0xFF800000 : f32
      %33 = vector.broadcast %cst_28 : f32 to vector<8x128xf32>
      %c0_29 = arith.constant 0 : index
      %c0_30 = arith.constant 0 : index
      %34 = vector.load %arg5[%c0_29, %c0_30] : memref<8x128xf32, #tpu.memory_space<vmem>>, vector<8x128xf32>
      tpu.vector_store %arg5[%c0_29, %c0_30], %33 {strides = array<i32>} : memref<8x128xf32, #tpu.memory_space<vmem>>, vector<8x128xf32>,
      %cst_31 = arith.constant 0.000000e+00 : f32
      %35 = vector.broadcast %cst_31 : f32 to vector<8x128xf32>
      %c0_32 = arith.constant 0 : index
      %c0_33 = arith.constant 0 : index
      %36 = vector.load %arg6[%c0_32, %c0_33] : memref<8x128xf32, #tpu.memory_space<vmem>>, vector<8x128xf32>
      tpu.vector_store %arg6[%c0_32, %c0_33], %35 {strides = array<i32>} : memref<8x128xf32, #tpu.memory_space<vmem>>, vector<8x128xf32>,
      %cst_34 = arith.constant 0.000000e+00 : f32
      %37 = vector.broadcast %cst_34 : f32 to vector<8x128xf32>
      %c0_35 = arith.constant 0 : index
      %c0_36 = arith.constant 0 : index
      %38 = vector.load %arg7[%c0_35, %c0_36] : memref<8x128xf32, #tpu.memory_space<vmem>>, vector<8x128xf32>
      tpu.vector_store %arg7[%c0_35, %c0_36], %37 {strides = array<i32>} : memref<8x128xf32, #tpu.memory_space<vmem>>, vector<8x128xf32>,
    } else {
    }
    %c0 = arith.constant 0 : index
    %c0_1 = arith.constant 0 : index
    %3 = vector.load %arg1[%c0, %c0_1] : memref<16x128xf32, #tpu.memory_space<vmem>>, vector<16x128xf32>
    %c0_2 = arith.constant 0 : index
    %c0_3 = arith.constant 0 : index
    %4 = vector.load %arg2[%c0_2, %c0_3] : memref<16x128xf32, #tpu.memory_space<vmem>>, vector<16x128xf32>
    %5 = arith.subf %3, %4 : vector<16x128xf32>
    %6 = math.absf %5 : vector<16x128xf32>
    %7 = arith.mulf %6, %6 : vector<16x128xf32>
    %8 = arith.mulf %7, %6 : vector<16x128xf32>
    %9 = vector.shape_cast %7 : vector<16x128xf32> to vector<2x8x128xf32>
    %c0_4 = arith.constant 0 : index
    %c0_5 = arith.constant 0 : index
    %10 = vector.load %arg4[%c0_4, %c0_5] : memref<8x128xf32, #tpu.memory_space<vmem>>, vector<8x128xf32>
    %cst = arith.constant dense<0x7F800000> : vector<8x128xf32>
    %11 = vector.multi_reduction <minimumf>, %9, %cst [0] : vector<2x8x128xf32> to vector<8x128xf32>
    %12 = arith.minimumf %10, %11 : vector<8x128xf32>
    %c0_6 = arith.constant 0 : index
    %c0_7 = arith.constant 0 : index
    %13 = vector.load %arg4[%c0_6, %c0_7] : memref<8x128xf32, #tpu.memory_space<vmem>>, vector<8x128xf32>
    tpu.vector_store %arg4[%c0_6, %c0_7], %12 {strides = array<i32>} : memref<8x128xf32, #tpu.memory_space<vmem>>, vector<8x128xf32>,
    %c0_8 = arith.constant 0 : index
    %c0_9 = arith.constant 0 : index
    %14 = vector.load %arg5[%c0_8, %c0_9] : memref<8x128xf32, #tpu.memory_space<vmem>>, vector<8x128xf32>
    %cst_10 = arith.constant dense<0xFF800000> : vector<8x128xf32>
    %15 = vector.multi_reduction <maximumf>, %9, %cst_10 [0] : vector<2x8x128xf32> to vector<8x128xf32>
    %16 = arith.maximumf %14, %15 : vector<8x128xf32>
    %c0_11 = arith.constant 0 : index
    %c0_12 = arith.constant 0 : index
    %17 = vector.load %arg5[%c0_11, %c0_12] : memref<8x128xf32, #tpu.memory_space<vmem>>, vector<8x128xf32>
    tpu.vector_store %arg5[%c0_11, %c0_12], %16 {strides = array<i32>} : memref<8x128xf32, #tpu.memory_space<vmem>>, vector<8x128xf32>,
    %c0_13 = arith.constant 0 : index
    %c0_14 = arith.constant 0 : index
    %18 = vector.load %arg6[%c0_13, %c0_14] : memref<8x128xf32, #tpu.memory_space<vmem>>, vector<8x128xf32>
    %19 = vector.shape_cast %6 : vector<16x128xf32> to vector<2x8x128xf32>
    %cst_15 = arith.constant dense<0.000000e+00> : vector<8x128xf32>
    %20 = vector.multi_reduction <add>, %19, %cst_15 [0] : vector<2x8x128xf32> to vector<8x128xf32>
    %21 = arith.addf %18, %20 : vector<8x128xf32>
    %c0_16 = arith.constant 0 : index
    %c0_17 = arith.constant 0 : index
    %22 = vector.load %arg6[%c0_16, %c0_17] : memref<8x128xf32, #tpu.memory_space<vmem>>, vector<8x128xf32>
    tpu.vector_store %arg6[%c0_16, %c0_17], %21 {strides = array<i32>} : memref<8x128xf32, #tpu.memory_space<vmem>>, vector<8x128xf32>,
    %c0_18 = arith.constant 0 : index
    %c0_19 = arith.constant 0 : index
    %23 = vector.load %arg7[%c0_18, %c0_19] : memref<8x128xf32, #tpu.memory_space<vmem>>, vector<8x128xf32>
    %24 = vector.shape_cast %8 : vector<16x128xf32> to vector<2x8x128xf32>
    %cst_20 = arith.constant dense<0.000000e+00> : vector<8x128xf32>
    %25 = vector.multi_reduction <add>, %24, %cst_20 [0] : vector<2x8x128xf32> to vector<8x128xf32>
    %26 = arith.addf %23, %25 : vector<8x128xf32>
    %c0_21 = arith.constant 0 : index
    %c0_22 = arith.constant 0 : index
    %27 = vector.load %arg7[%c0_21, %c0_22] : memref<8x128xf32, #tpu.memory_space<vmem>>, vector<8x128xf32>
    tpu.vector_store %arg7[%c0_21, %c0_22], %26 {strides = array<i32>} : memref<8x128xf32, #tpu.memory_space<vmem>>, vector<8x128xf32>,
    %c0_i32_23 = arith.constant 0 : i32
    %28 = arith.cmpi eq, %arg0, %c0_i32_23 : i32
    %29 = arith.extui %28 : i1 to i32
    %c0_i32_24 = arith.constant 0 : i32
    %30 = arith.cmpi ne, %29, %c0_i32_24 : i32
    scf.if %30 {
      %c0_25 = arith.constant 0 : index
      %c0_26 = arith.constant 0 : index
      %31 = vector.load %arg4[%c0_25, %c0_26] : memref<8x128xf32, #tpu.memory_space<vmem>>, vector<8x128xf32>
      %c0_27 = arith.constant 0 : index
      %c0_28 = arith.constant 0 : index
      %c0_29 = arith.constant 0 : index
      %32 = vector.load %arg3[%c0_27, %c0_28, %c0_29] : memref<4x8x128xf32, #tpu.memory_space<vmem>>, vector<1x8x128xf32>
      %33 = vector.shape_cast %32 : vector<1x8x128xf32> to vector<8x128xf32>
      %34 = vector.shape_cast %31 : vector<8x128xf32> to vector<1x8x128xf32>
      tpu.vector_store %arg3[%c0_27, %c0_28, %c0_29], %34 {strides = array<i32>} : memref<4x8x128xf32, #tpu.memory_space<vmem>>, vector<1x8x128xf32>,
      %c0_30 = arith.constant 0 : index
      %c0_31 = arith.constant 0 : index
      %35 = vector.load %arg5[%c0_30, %c0_31] : memref<8x128xf32, #tpu.memory_space<vmem>>, vector<8x128xf32>
      %c1 = arith.constant 1 : index
      %c0_32 = arith.constant 0 : index
      %c0_33 = arith.constant 0 : index
      %36 = vector.load %arg3[%c1, %c0_32, %c0_33] : memref<4x8x128xf32, #tpu.memory_space<vmem>>, vector<1x8x128xf32>
      %37 = vector.shape_cast %36 : vector<1x8x128xf32> to vector<8x128xf32>
      %38 = vector.shape_cast %35 : vector<8x128xf32> to vector<1x8x128xf32>
      tpu.vector_store %arg3[%c1, %c0_32, %c0_33], %38 {strides = array<i32>} : memref<4x8x128xf32, #tpu.memory_space<vmem>>, vector<1x8x128xf32>,
      %c0_34 = arith.constant 0 : index
      %c0_35 = arith.constant 0 : index
      %39 = vector.load %arg6[%c0_34, %c0_35] : memref<8x128xf32, #tpu.memory_space<vmem>>, vector<8x128xf32>
      %c2 = arith.constant 2 : index
      %c0_36 = arith.constant 0 : index
      %c0_37 = arith.constant 0 : index
      %40 = vector.load %arg3[%c2, %c0_36, %c0_37] : memref<4x8x128xf32, #tpu.memory_space<vmem>>, vector<1x8x128xf32>
      %41 = vector.shape_cast %40 : vector<1x8x128xf32> to vector<8x128xf32>
      %42 = vector.shape_cast %39 : vector<8x128xf32> to vector<1x8x128xf32>
      tpu.vector_store %arg3[%c2, %c0_36, %c0_37], %42 {strides = array<i32>} : memref<4x8x128xf32, #tpu.memory_space<vmem>>, vector<1x8x128xf32>,
      %c0_38 = arith.constant 0 : index
      %c0_39 = arith.constant 0 : index
      %43 = vector.load %arg7[%c0_38, %c0_39] : memref<8x128xf32, #tpu.memory_space<vmem>>, vector<8x128xf32>
      %c3 = arith.constant 3 : index
      %c0_40 = arith.constant 0 : index
      %c0_41 = arith.constant 0 : index
      %44 = vector.load %arg3[%c3, %c0_40, %c0_41] : memref<4x8x128xf32, #tpu.memory_space<vmem>>, vector<1x8x128xf32>
      %45 = vector.shape_cast %44 : vector<1x8x128xf32> to vector<8x128xf32>
      %46 = vector.shape_cast %43 : vector<8x128xf32> to vector<1x8x128xf32>
      tpu.vector_store %arg3[%c3, %c0_40, %c0_41], %46 {strides = array<i32>} : memref<4x8x128xf32, #tpu.memory_space<vmem>>, vector<1x8x128xf32>,
    } else {
    }
    return
  }
  func.func @transform_0(%arg0: i32) -> (i32, i32) {
    %c0_i32 = arith.constant 0 : i32
    %c0_i32_0 = arith.constant 0 : i32
    return %arg0, %c0_i32 : i32, i32
  }
  func.func @transform_1(%arg0: i32) -> (i32, i32) {
    %c0_i32 = arith.constant 0 : i32
    %c0_i32_0 = arith.constant 0 : i32
    return %arg0, %c0_i32 : i32, i32
  }
  func.func @transform_2(%arg0: i32) -> (i32, i32, i32) {
    %c0_i32 = arith.constant 0 : i32
    %c0_i32_0 = arith.constant 0 : i32
    %c0_i32_1 = arith.constant 0 : i32
    %c0_i32_2 = arith.constant 0 : i32
    return %c0_i32, %c0_i32_0, %c0_i32_1 : i32, i32, i32
  }
}

</mosaic_0001>

<llo_original>
// kernel: tpu_custom_call.1
$region0: #{tpu_custom_call.1}
  #allocation0 [shape = 'u32[]', space=smem, size = 0x4, offset = 0x4, fixed_abs, tag = 'smem constant byte address 0x4 - core index']
  #allocation1 [shape = 'u32[144,128]{1,0:T(1,128)}', space=vmem, size = 0x12000, scoped, tag = 'internal scratch']
  #allocation2 [shape = 'f32[8,128]{1,0:T(8,128)}', space=vmem, size = 0x1000, scoped, tag = 'scratch operand']
  #allocation3 [shape = 'f32[8,128]{1,0:T(8,128)}', space=vmem, size = 0x1000, scoped, tag = 'scratch operand']
  #allocation4 [shape = 'f32[8,128]{1,0:T(8,128)}', space=vmem, size = 0x1000, scoped, tag = 'scratch operand']
  #allocation5 [shape = 'f32[8,128]{1,0:T(8,128)}', space=vmem, size = 0x1000, scoped, tag = 'scratch operand']
  %s0 = inlined_call_operand.hbm [shape: f32[16,128], index: 0, kind: input, shape index: {}]
  %s1 = inlined_call_operand.hbm [shape: f32[16,128], index: 1, kind: input, shape index: {}]
  %s2 = inlined_call_operand.hbm [shape: f32[4,8,128], index: 2, kind: output, shape index: {}]
  %s3 = sld [smem:[#allocation0]]
  $region34: #{tpu_custom_call.1} parent=0
    _
  %s5 = ssub.s32 1, %s3
  %s6 = scalar_select 0, %s5, %s3
  $region1: #{tpu_custom_call.1} parent=0
    #allocation6 [shape = 'u8[8192]{0}', space=vmem, size = 0x2000, scoped, tag = 'input window, operand 0, single buffered']
    #allocation7 [shape = 's32[1]{0}', space=sflag, size = 0x4, scoped, tag = 'scoped memory for tpu_custom_call.1']
    #allocation8 [shape = 's32[1]{0}', space=sflag, size = 0x4, scoped, tag = 'scoped memory for tpu_custom_call.1']
    #allocation9 [shape = 'u8[8192]{0}', space=vmem, size = 0x2000, scoped, tag = 'input window, operand 1, single buffered']
    #allocation10 [shape = 's32[1]{0}', space=sflag, size = 0x4, scoped, tag = 'scoped memory for tpu_custom_call.1']
    #allocation11 [shape = 'u8[16384]{0}', space=vmem, size = 0x4000, scoped, tag = 'output window, operand 0, single buffered']
    %7 = vsyncpa [#allocation7], 0
    %8 = vsyncpa [#allocation10], 0
    %9 = vsyncpa [#allocation8], 0
    // Predicated region
    $region2: #{tpu_custom_call.1} parent=1 // pred_check
      _
    $region3: #{tpu_custom_call.1} parent=1 // pred_check_branch
      %11 = sbr.rel (0) target = $region5
    $region4: #{tpu_custom_call.1} parent=1 // pred_region
      %s13 = ssub.s32 256, 256
      %14 = vsyncadd [#allocation7], %s13
      %s15 = sshll.u32 [#allocation6], 4
      %s16 = int_to_ptr.vmem [resolvable:$true] %s15
      %21 = dma.hbm_to_vmem [thread:$0]  %s0, 256, %s16, [#allocation7], 128, 128, 8
    $region5: #{tpu_custom_call.1} parent=1 // pred_fallthru
      _
    // Predicated region
    $region6: #{tpu_custom_call.1} parent=1 // pred_check
      _
    $region7: #{tpu_custom_call.1} parent=1 // pred_check_branch
      %23 = sbr.rel (0) target = $region9
    $region8: #{tpu_custom_call.1} parent=1 // pred_region
      %s25 = ssub.s32 256, 256
      %26 = vsyncadd [#allocation10], %s25
      %s27 = sshll.u32 [#allocation9], 4
      %s28 = int_to_ptr.vmem [resolvable:$true] %s27
      %33 = dma.hbm_to_vmem [thread:$0]  %s1, 256, %s28, [#allocation10], 128, 128, 8
    $region9: #{tpu_custom_call.1} parent=1 // pred_fallthru
      _
    // Predicated region
    $region10: #{tpu_custom_call.1} parent=1 // pred_check
      _
    $region11: #{tpu_custom_call.1} parent=1 // pred_check_branch
      %35 = sbr.rel (0) target = $region13
    $region12: #{tpu_custom_call.1} parent=1 // pred_region
      %36 = dma.done [#allocation7], 256
    $region13: #{tpu_custom_call.1} parent=1 // pred_fallthru
      _
    // Predicated region
    $region14: #{tpu_custom_call.1} parent=1 // pred_check
      _
    $region15: #{tpu_custom_call.1} parent=1 // pred_check_branch
      %38 = sbr.rel (0) target = $region17
    $region16: #{tpu_custom_call.1} parent=1 // pred_region
      %39 = dma.done [#allocation10], 256
    $region17: #{tpu_custom_call.1} parent=1 // pred_fallthru
      _
    %p40 = scmp.eq.s32.totalorder 0, 0
    // Predicated region
    $region18: #{tpu_custom_call.1} parent=1 // pred_check
      %p41 = pneg %p40
    $region19: #{tpu_custom_call.1} parent=1 // pred_check_branch
      %43 = sbr.rel (%p41) target = $region21
    $region20: #{tpu_custom_call.1} parent=1 // pred_region
      %44 = vst [vmem:[#allocation2] sm:$0xff] inf
      %45 = vst [vmem:[#allocation3] sm:$0xff] -inf
      %46 = vst [vmem:[#allocation4] sm:$0xff] 0.0
      %47 = vst [vmem:[#allocation5] sm:$0xff] 0.0
    $region21: #{tpu_custom_call.1} parent=1 // pred_fallthru
      _
    %v48 = vld [vmem:[#allocation6] sm:$0xff]
    %v49 = vld [vmem:[#allocation6 + $0x8] sm:$0xff]
    %v50 = vld [vmem:[#allocation9] sm:$0xff]
    %v51 = vld [vmem:[#allocation9 + $0x8] sm:$0xff]
    %v52 = vsub.f32 %v48, %v50
    %v53 = vsub.f32 %v49, %v51
    %v54 = vand.u32 2147483647, %v52
    %v55 = vand.u32 2147483647, %v53
    %v56 = vmul.f32 %v54, %v54
    %v57 = vmul.f32 %v55, %v55
    %v58 = vmul.f32 %v56, %v54
    %v59 = vmul.f32 %v57, %v55
    %v60 = vld [vmem:[#allocation2] sm:$0xff]
    %v61 = vmin.f32 %v56, %v57
    %v62 = vmin.f32 %v60, %v61
    %63 = vst [vmem:[#allocation2] sm:$0xff] %v62
    %v64 = vld [vmem:[#allocation3] sm:$0xff]
    %v65 = vmax.f32 %v56, %v57
    %v66 = vmax.f32 %v64, %v65
    %67 = vst [vmem:[#allocation3] sm:$0xff] %v66
    %v68 = vld [vmem:[#allocation4] sm:$0xff]
    %v69 = vadd.f32 %v54, %v55
    %v70 = vadd.f32 %v68, %v69
    %71 = vst [vmem:[#allocation4] sm:$0xff] %v70
    %v72 = vld [vmem:[#allocation5] sm:$0xff]
    %v73 = vadd.f32 %v58, %v59
    %v74 = vadd.f32 %v72, %v73
    %75 = vst [vmem:[#allocation5] sm:$0xff] %v74
    // Predicated region
    $region22: #{tpu_custom_call.1} parent=1 // pred_check
      %p76 = pneg %p40
    $region23: #{tpu_custom_call.1} parent=1 // pred_check_branch
      %78 = sbr.rel (%p76) target = $region25
    $region24: #{tpu_custom_call.1} parent=1 // pred_region
      %v79 = vld [vmem:[#allocation2] sm:$0xff]
      %80 = vst [vmem:[#allocation11] sm:$0xff] %v79
      %v81 = vld [vmem:[#allocation3] sm:$0xff]
      %s82 = scalar_lea.vmem [#allocation11], 8
      %83 = vst [vmem:[%s82] sm:$0xff] %v81
      %v84 = vld [vmem:[#allocation4] sm:$0xff]
      %s85 = scalar_lea.vmem [#allocation11], 16
      %86 = vst [vmem:[%s85] sm:$0xff] %v84
      %v87 = vld [vmem:[#allocation5] sm:$0xff]
      %s88 = scalar_lea.vmem [#allocation11], 24
      %89 = vst [vmem:[%s88] sm:$0xff] %v87
    $region25: #{tpu_custom_call.1} parent=1 // pred_fallthru
      _
    // Predicated region
    $region26: #{tpu_custom_call.1} parent=1 // pred_check
      _
    $region27: #{tpu_custom_call.1} parent=1 // pred_check_branch
      %91 = sbr.rel (0) target = $region29
    $region28: #{tpu_custom_call.1} parent=1 // pred_region
      %s93 = ssub.s32 512, 512
      %94 = vsyncadd [#allocation8], %s93
      %s95 = sshll.u32 [#allocation11], 4
      %s96 = int_to_ptr.vmem [resolvable:$true] %s95
      %101 = dma.vmem_to_hbm [thread:$0]  %s96, 512, %s2, [#allocation8], 128, 128, 8
    $region29: #{tpu_custom_call.1} parent=1 // pred_fallthru
      _
    // Predicated region
    $region30: #{tpu_custom_call.1} parent=1 // pred_check
      _
    $region31: #{tpu_custom_call.1} parent=1 // pred_check_branch
      %103 = sbr.rel (0) target = $region33
    $region32: #{tpu_custom_call.1} parent=1 // pred_region
      %104 = dma.done [#allocation8], 512
    $region33: #{tpu_custom_call.1} parent=1 // pred_fallthru
      _
    %105 = vsyncpa [#allocation7], 1
    %106 = vsyncpa [#allocation10], 1
    %107 = vsyncpa [#allocation8], 1

</llo_original>
